<compile_context>
chip_gen: v7x
topology: tpu7x:2x2x1
jax: 0.10.0
libtpu: 0.0.40
codegen_flags: <defaults>
</compile_context>

<pallas_src>
import functools

import jax
import jax.numpy as jnp
from jax.experimental import pallas as pl
from jax.experimental.pallas import tpu as pltpu


def _sigmoid(z):
    return 1.0 / (1.0 + jnp.exp(-z))


def cerebral_lstm_kernel(combined_ref, ucp_ref, lcp_ref, w_ref, b_ref,
                         out_ref, acc_ref, *, hidden_size):
    """One batch tile, iterating over K (= hidden+input) reduction blocks.

    combined_ref : (tb, tk)   bf16   slice of concat([h_prev, x], 1)
    ucp_ref      : (tb, H)    f32    previous upper cell state
    lcp_ref      : (tb, H)    f32    previous lower cell state
    w_ref        : (tk, 8H)   bf16   fused gate weights (uf,ui,uc,uo,lf,li,lc,lo)
    b_ref        : (1, 8H)    f32    fused gate biases
    out_ref      : (tb, 3H)   f32    output slab: [h_next | UC | LC]
    acc_ref      : (tb, 8H)   f32    VMEM accumulator scratch
    """
    k = pl.program_id(1)

    @pl.when(k == 0)
    def _():
        acc_ref[...] = jnp.zeros_like(acc_ref)

    # Single wide MXU push per K block, f32 accumulation.
    acc_ref[...] += jnp.dot(combined_ref[...], w_ref[...],
                            preferred_element_type=jnp.float32)

    @pl.when(k == pl.num_programs(1) - 1)
    def _():
        H = hidden_size
        gates = acc_ref[...] + b_ref[...]            # (tb, 8H) f32, bias once

        uf = _sigmoid(gates[:, 0 * H:1 * H])
        ui = _sigmoid(gates[:, 1 * H:2 * H])
        uc_t = jnp.tanh(gates[:, 2 * H:3 * H])
        uo = _sigmoid(gates[:, 3 * H:4 * H])
        lf = _sigmoid(gates[:, 4 * H:5 * H])
        li = _sigmoid(gates[:, 5 * H:6 * H])
        lc_t = jnp.tanh(gates[:, 6 * H:7 * H])
        lo = _sigmoid(gates[:, 7 * H:8 * H])

        UC = uf * ucp_ref[...] + ui * uc_t           # f32 cell states
        LC = lf * lcp_ref[...] + li * lc_t
        h = uo * jnp.tanh(UC) + lo * jnp.tanh(LC)

        out_ref[:, 0 * H:1 * H] = h
        out_ref[:, 1 * H:2 * H] = UC
        out_ref[:, 2 * H:3 * H] = LC


def _round_up(n, m):
    return -(-n // m) * m


def _pick_k_tile(D):
    """Tile K (hidden+input) only when it is large and 128-aligned."""
    if D <= 512 or D % 128 != 0:
        return D
    for t in (512, 256, 128):
        if D % t == 0:
            return t
    return D


_W_NAMES = ("W_uf", "W_ui", "W_uc", "W_uo", "W_lf", "W_li", "W_lc", "W_lo")
_B_NAMES = ("b_uf", "b_ui", "b_uc", "b_uo", "b_lf", "b_li", "b_lc", "b_lo")


def fuse_params(params, matmul_dtype=jnp.bfloat16):
    """Concatenate the 8 gate weight matrices / biases into (D, 8H) / (1, 8H).

    Call once (outside any recurrent/time loop) so repeated cell invocations
    do not re-copy the weights in HBM every step.
    """
    W = jnp.concatenate([params[n] for n in _W_NAMES], axis=1).astype(matmul_dtype)
    b = jnp.concatenate([params[n] for n in _B_NAMES]).reshape(1, -1).astype(jnp.float32)
    return W, b


def cerebral_lstm_cell(x, h_prev, cell_states, params, *,
                       matmul_dtype=jnp.bfloat16, fused=None):
    """Pallas-backed forward pass of CerebralLSTMCell.

    x: (B, input_size), h_prev: (B, hidden), cell_states: (UC_prev, LC_prev),
    params: dict with W_* (hidden+input, hidden) and b_* (hidden,).
    Optionally pass `fused=(W, b)` from `fuse_params` to reuse pre-fused
    weights across time steps.  Returns (h_next, (UC, LC)).
    """
    UC_prev, LC_prev = cell_states
    B, H = h_prev.shape
    I = x.shape[1]
    D = H + I
    NG = 8 * H

    if fused is None:
        W, bias = fuse_params(params, matmul_dtype)
    else:
        W, bias = fused
        W = W.astype(matmul_dtype)
        bias = bias.reshape(1, NG).astype(jnp.float32)

    # Combined LHS shared by all 8 gates (activation concat is B*D elements:
    # negligible next to the D*8H weight traffic).
    combined = jnp.concatenate([h_prev, x], axis=1).astype(matmul_dtype)
    UC_prev = UC_prev.astype(jnp.float32)
    LC_prev = LC_prev.astype(jnp.float32)

    # Pad batch rows to a sublane multiple (8); large batches to a 128 multiple.
    Bp = _round_up(max(B, 1), 8)
    if Bp > 128:
        Bp = _round_up(B, 128)
    pad = Bp - B
    if pad:
        combined = jnp.pad(combined, ((0, pad), (0, 0)))
        UC_prev = jnp.pad(UC_prev, ((0, pad), (0, 0)))
        LC_prev = jnp.pad(LC_prev, ((0, pad), (0, 0)))

    tb = 128 if Bp >= 128 else Bp
    tk = _pick_k_tile(D)
    grid = (Bp // tb, D // tk)          # K (reduction) is the innermost axis

    # TODO(synk): add gate-axis (8H) tiling for very large hidden sizes where a
    # (tk, 8H) bf16 weight tile would no longer fit comfortably in VMEM.

    kernel = functools.partial(cerebral_lstm_kernel, hidden_size=H)

    out = pl.pallas_call(
        kernel,
        out_shape=jax.ShapeDtypeStruct((Bp, 3 * H), jnp.float32),
        grid=grid,
        in_specs=[
            pl.BlockSpec((tb, tk), lambda b, k: (b, k)),    # combined (LHS)
            pl.BlockSpec((tb, H), lambda b, k: (b, 0)),     # UC_prev
            pl.BlockSpec((tb, H), lambda b, k: (b, 0)),     # LC_prev
            pl.BlockSpec((tk, NG), lambda b, k: (k, 0)),    # fused weights
            pl.BlockSpec((1, NG), lambda b, k: (0, 0)),     # fused bias
        ],
        out_specs=pl.BlockSpec((tb, 3 * H), lambda b, k: (b, 0)),
        scratch_shapes=[pltpu.VMEM((tb, NG), jnp.float32)],
        compiler_params=pltpu.CompilerParams(
            dimension_semantics=("parallel", "arbitrary")),
    )(combined, UC_prev, LC_prev, W, bias)

    h_next = out[:B, 0:H].astype(h_prev.dtype)
    UC = out[:B, H:2 * H]
    LC = out[:B, 2 * H:3 * H]
    return h_next, (UC, LC)


def init_params(key, input_size, hidden_size, dtype=jnp.float32):
    """Deterministic synthetic init mimicking the shapes of the PyTorch module.

    Approximates kaiming-normal(fan_in, sigmoid) / xavier-normal(tanh gain);
    exact torch RNG values are not reproduced (synthetic kernel).
    """
    D = input_size + hidden_size
    fan_in_std = 1.0 / jnp.sqrt(D)                              # kaiming, sigmoid gain=1
    xav_std = (5.0 / 3.0) * jnp.sqrt(2.0 / (D + hidden_size))   # xavier, tanh gain
    names_sig = ["W_uf", "W_ui", "W_uo", "W_lf", "W_li", "W_lo"]
    names_tanh = ["W_uc", "W_lc"]
    keys = jax.random.split(key, len(names_sig) + len(names_tanh))
    params = {}
    for i, n in enumerate(names_sig):
        params[n] = (jax.random.normal(keys[i], (D, hidden_size)) * fan_in_std).astype(dtype)
    for j, n in enumerate(names_tanh):
        params[n] = (jax.random.normal(keys[len(names_sig) + j], (D, hidden_size))
                     * xav_std).astype(dtype)
    # Upper/lower weights drawn independently, so the "too similar"
    # soft-complementarity branch of the PyTorch module never triggers.
    for n in _B_NAMES:
        params[n] = jnp.zeros((hidden_size,), dtype)
    return params


def _reference_forward(x, h_prev, cell_states, p, matmul_dtype=jnp.bfloat16):
    """Pure-JAX reference with the same bf16-matmul / f32-accumulate recipe."""
    UC_prev, LC_prev = cell_states
    c = jnp.concatenate([h_prev, x], axis=1).astype(matmul_dtype)

    def gate(wn, bn):
        return jnp.dot(c, p[wn].astype(matmul_dtype),
                       preferred_element_type=jnp.float32) + p[bn].astype(jnp.float32)

    sig = lambda z: 1.0 / (1.0 + jnp.exp(-z))
    Uf = sig(gate("W_uf", "b_uf"))
    Ui = sig(gate("W_ui", "b_ui"))
    UC = Uf * UC_prev + Ui * jnp.tanh(gate("W_uc", "b_uc"))
    Uo = sig(gate("W_uo", "b_uo"))
    Lf = sig(gate("W_lf", "b_lf"))
    Li = sig(gate("W_li", "b_li"))
    LC = Lf * LC_prev + Li * jnp.tanh(gate("W_lc", "b_lc"))
    Lo = sig(gate("W_lo", "b_lo"))
    h = Uo * jnp.tanh(UC) + Lo * jnp.tanh(LC)
    return h, (UC, LC)


if __name__ == "__main__":
    batch, input_size, hidden_size = 2, 16, 32
    key = jax.random.PRNGKey(0)
    k_p, k_x, k_h, k_uc, k_lc = jax.random.split(key, 5)

    params = init_params(k_p, input_size, hidden_size)
    x = jax.random.normal(k_x, (batch, input_size), jnp.float32)
    h_prev = jax.random.normal(k_h, (batch, hidden_size), jnp.float32)
    UC_prev = jax.random.normal(k_uc, (batch, hidden_size), jnp.float32)
    LC_prev = jax.random.normal(k_lc, (batch, hidden_size), jnp.float32)

    fwd = jax.jit(cerebral_lstm_cell)
    h_next, (UC, LC) = fwd(x, h_prev, (UC_prev, LC_prev), params)
    jax.block_until_ready((h_next, UC, LC))

    # Sanity check against a pure-JAX reference using the same bf16 matmul
    # inputs + f32 accumulation (elementwise/cell-state math in f32).
    h_ref, (UC_ref, LC_ref) = _reference_forward(x, h_prev, (UC_prev, LC_prev), params)
    assert jnp.allclose(h_next, h_ref, atol=2e-3), "h mismatch"
    assert jnp.allclose(UC, UC_ref, atol=2e-3), "UC mismatch"
    assert jnp.allclose(LC, LC_ref, atol=2e-3), "LC mismatch"

    print("KERNEL_OK")
</pallas_src>

<mosaic_0001>
module attributes {stable_mosaic.version = 11 : i64} {
  func.func @cerebral_lstm_kernel(%arg0: i32, %arg1: i32, %arg2: memref<8x48xbf16, #tpu.memory_space<vmem>>, %arg3: memref<8x32xf32, #tpu.memory_space<vmem>>, %arg4: memref<8x32xf32, #tpu.memory_space<vmem>>, %arg5: memref<48x256xbf16, #tpu.memory_space<vmem>>, %arg6: memref<1x256xf32, #tpu.memory_space<vmem>>, %arg7: memref<8x96xf32, #tpu.memory_space<vmem>>, %arg8: memref<8x256xf32, #tpu.memory_space<vmem>>) attributes {dimension_semantics = [#tpu.dimension_semantics<parallel>, #tpu.dimension_semantics<arbitrary>], iteration_bounds = array<i64: 1, 1>, scalar_prefetch = 0 : i64, scratch_operands = 1 : i64, tpu.core_type = #tpu.core_type<tc>, window_params = [{transform_indices = @transform_0, window_bounds = array<i64: 8, 48>}, {transform_indices = @transform_1, window_bounds = array<i64: 8, 32>}, {transform_indices = @transform_2, window_bounds = array<i64: 8, 32>}, {transform_indices = @transform_3, window_bounds = array<i64: 48, 256>}, {pipeline_mode = #tpu.pipeline_mode<synchronous>, transform_indices = @transform_4, window_bounds = array<i64: 1, 256>}, {transform_indices = @transform_5, window_bounds = array<i64: 8, 96>}]} {
    %c0_i32 = arith.constant 0 : i32
    %0 = arith.cmpi eq, %arg1, %c0_i32 : i32
    %1 = arith.extui %0 : i1 to i32
    %c0_i32_0 = arith.constant 0 : i32
    %2 = arith.cmpi ne, %1, %c0_i32_0 : i32
    scf.if %2 {
      %cst_10 = arith.constant 0.000000e+00 : f32
      %12 = vector.broadcast %cst_10 : f32 to vector<8x256xf32>
      %c0_11 = arith.constant 0 : index
      %c0_12 = arith.constant 0 : index
      %13 = vector.load %arg8[%c0_11, %c0_12] : memref<8x256xf32, #tpu.memory_space<vmem>>, vector<8x256xf32>
      tpu.vector_store %arg8[%c0_11, %c0_12], %12 {strides = array<i32>} : memref<8x256xf32, #tpu.memory_space<vmem>>, vector<8x256xf32>,
    } else {
    }
    %c0 = arith.constant 0 : index
    %c0_1 = arith.constant 0 : index
    %3 = vector.load %arg8[%c0, %c0_1] : memref<8x256xf32, #tpu.memory_space<vmem>>, vector<8x256xf32>
    %c0_2 = arith.constant 0 : index
    %c0_3 = arith.constant 0 : index
    %4 = vector.load %arg2[%c0_2, %c0_3] : memref<8x48xbf16, #tpu.memory_space<vmem>>, vector<8x48xbf16>
    %c0_4 = arith.constant 0 : index
    %c0_5 = arith.constant 0 : index
    %5 = vector.load %arg5[%c0_4, %c0_5] : memref<48x256xbf16, #tpu.memory_space<vmem>>, vector<48x256xbf16>
    %cst = arith.constant dense<0.000000e+00> : vector<8x256xf32>
    %6 = tpu.matmul %4, %5, %cst {dimension_numbers = #tpu.dot_dimension_numbers<[1], [0], [0], [1], [0, 0, 1, 1], [], []>} : vector<8x48xbf16>, vector<48x256xbf16>, vector<8x256xf32> -> vector<8x256xf32>
    %7 = arith.addf %3, %6 : vector<8x256xf32>
    %c0_6 = arith.constant 0 : index
    %c0_7 = arith.constant 0 : index
    %8 = vector.load %arg8[%c0_6, %c0_7] : memref<8x256xf32, #tpu.memory_space<vmem>>, vector<8x256xf32>
    tpu.vector_store %arg8[%c0_6, %c0_7], %7 {strides = array<i32>} : memref<8x256xf32, #tpu.memory_space<vmem>>, vector<8x256xf32>,
    %c0_i32_8 = arith.constant 0 : i32
    %9 = arith.cmpi eq, %arg1, %c0_i32_8 : i32
    %10 = arith.extui %9 : i1 to i32
    %c0_i32_9 = arith.constant 0 : i32
    %11 = arith.cmpi ne, %10, %c0_i32_9 : i32
    scf.if %11 {
      %c0_10 = arith.constant 0 : index
      %c0_11 = arith.constant 0 : index
      %12 = vector.load %arg8[%c0_10, %c0_11] : memref<8x256xf32, #tpu.memory_space<vmem>>, vector<8x256xf32>
      %c0_12 = arith.constant 0 : index
      %c0_13 = arith.constant 0 : index
      %13 = vector.load %arg6[%c0_12, %c0_13] : memref<1x256xf32, #tpu.memory_space<vmem>>, vector<1x256xf32>
      %14 = vector.broadcast %13 : vector<1x256xf32> to vector<8x256xf32>
      %15 = arith.addf %12, %14 : vector<8x256xf32>
      %16 = vector.extract_strided_slice %15 {offsets = [0, 0], sizes = [8, 32], strides = [1, 1]} : vector<8x256xf32> to vector<8x32xf32>
      %cst_14 = arith.constant 0.000000e+00 : f32
      %17 = vector.broadcast %cst_14 : f32 to vector<8x32xf32>
      %18 = arith.subf %17, %16 : vector<8x32xf32>
      %19 = math.exp %18 : vector<8x32xf32>
      %cst_15 = arith.constant 1.000000e+00 : f32
      %20 = vector.broadcast %cst_15 : f32 to vector<8x32xf32>
      %21 = arith.addf %20, %19 : vector<8x32xf32>
      %cst_16 = arith.constant 1.000000e+00 : f32
      %22 = vector.broadcast %cst_16 : f32 to vector<8x32xf32>
      %23 = arith.divf %22, %21 : vector<8x32xf32>
      %24 = vector.extract_strided_slice %15 {offsets = [0, 32], sizes = [8, 32], strides = [1, 1]} : vector<8x256xf32> to vector<8x32xf32>
      %cst_17 = arith.constant 0.000000e+00 : f32
      %25 = vector.broadcast %cst_17 : f32 to vector<8x32xf32>
      %26 = arith.subf %25, %24 : vector<8x32xf32>
      %27 = math.exp %26 : vector<8x32xf32>
      %cst_18 = arith.constant 1.000000e+00 : f32
      %28 = vector.broadcast %cst_18 : f32 to vector<8x32xf32>
      %29 = arith.addf %28, %27 : vector<8x32xf32>
      %cst_19 = arith.constant 1.000000e+00 : f32
      %30 = vector.broadcast %cst_19 : f32 to vector<8x32xf32>
      %31 = arith.divf %30, %29 : vector<8x32xf32>
      %32 = vector.extract_strided_slice %15 {offsets = [0, 64], sizes = [8, 32], strides = [1, 1]} : vector<8x256xf32> to vector<8x32xf32>
      %33 = math.tanh %32 : vector<8x32xf32>
      %34 = vector.extract_strided_slice %15 {offsets = [0, 96], sizes = [8, 32], strides = [1, 1]} : vector<8x256xf32> to vector<8x32xf32>
      %cst_20 = arith.constant 0.000000e+00 : f32
      %35 = vector.broadcast %cst_20 : f32 to vector<8x32xf32>
      %36 = arith.subf %35, %34 : vector<8x32xf32>
      %37 = math.exp %36 : vector<8x32xf32>
      %cst_21 = arith.constant 1.000000e+00 : f32
      %38 = vector.broadcast %cst_21 : f32 to vector<8x32xf32>
      %39 = arith.addf %38, %37 : vector<8x32xf32>
      %cst_22 = arith.constant 1.000000e+00 : f32
      %40 = vector.broadcast %cst_22 : f32 to vector<8x32xf32>
      %41 = arith.divf %40, %39 : vector<8x32xf32>
      %42 = vector.extract_strided_slice %15 {offsets = [0, 128], sizes = [8, 32], strides = [1, 1]} : vector<8x256xf32> to vector<8x32xf32>
      %cst_23 = arith.constant 0.000000e+00 : f32
      %43 = vector.broadcast %cst_23 : f32 to vector<8x32xf32>
      %44 = arith.subf %43, %42 : vector<8x32xf32>
      %45 = math.exp %44 : vector<8x32xf32>
      %cst_24 = arith.constant 1.000000e+00 : f32
      %46 = vector.broadcast %cst_24 : f32 to vector<8x32xf32>
      %47 = arith.addf %46, %45 : vector<8x32xf32>
      %cst_25 = arith.constant 1.000000e+00 : f32
      %48 = vector.broadcast %cst_25 : f32 to vector<8x32xf32>
      %49 = arith.divf %48, %47 : vector<8x32xf32>
      %50 = vector.extract_strided_slice %15 {offsets = [0, 160], sizes = [8, 32], strides = [1, 1]} : vector<8x256xf32> to vector<8x32xf32>
      %cst_26 = arith.constant 0.000000e+00 : f32
      %51 = vector.broadcast %cst_26 : f32 to vector<8x32xf32>
      %52 = arith.subf %51, %50 : vector<8x32xf32>
      %53 = math.exp %52 : vector<8x32xf32>
      %cst_27 = arith.constant 1.000000e+00 : f32
      %54 = vector.broadcast %cst_27 : f32 to vector<8x32xf32>
      %55 = arith.addf %54, %53 : vector<8x32xf32>
      %cst_28 = arith.constant 1.000000e+00 : f32
      %56 = vector.broadcast %cst_28 : f32 to vector<8x32xf32>
      %57 = arith.divf %56, %55 : vector<8x32xf32>
      %58 = vector.extract_strided_slice %15 {offsets = [0, 192], sizes = [8, 32], strides = [1, 1]} : vector<8x256xf32> to vector<8x32xf32>
      %59 = math.tanh %58 : vector<8x32xf32>
      %60 = vector.extract_strided_slice %15 {offsets = [0, 224], sizes = [8, 32], strides = [1, 1]} : vector<8x256xf32> to vector<8x32xf32>
      %cst_29 = arith.constant 0.000000e+00 : f32
      %61 = vector.broadcast %cst_29 : f32 to vector<8x32xf32>
      %62 = arith.subf %61, %60 : vector<8x32xf32>
      %63 = math.exp %62 : vector<8x32xf32>
      %cst_30 = arith.constant 1.000000e+00 : f32
      %64 = vector.broadcast %cst_30 : f32 to vector<8x32xf32>
      %65 = arith.addf %64, %63 : vector<8x32xf32>
      %cst_31 = arith.constant 1.000000e+00 : f32
      %66 = vector.broadcast %cst_31 : f32 to vector<8x32xf32>
      %67 = arith.divf %66, %65 : vector<8x32xf32>
      %c0_32 = arith.constant 0 : index
      %c0_33 = arith.constant 0 : index
      %68 = vector.load %arg3[%c0_32, %c0_33] : memref<8x32xf32, #tpu.memory_space<vmem>>, vector<8x32xf32>
      %69 = arith.mulf %23, %68 : vector<8x32xf32>
      %70 = arith.mulf %31, %33 : vector<8x32xf32>
      %71 = arith.addf %69, %70 : vector<8x32xf32>
      %c0_34 = arith.constant 0 : index
      %c0_35 = arith.constant 0 : index
      %72 = vector.load %arg4[%c0_34, %c0_35] : memref<8x32xf32, #tpu.memory_space<vmem>>, vector<8x32xf32>
      %73 = arith.mulf %49, %72 : vector<8x32xf32>
      %74 = arith.mulf %57, %59 : vector<8x32xf32>
      %75 = arith.addf %73, %74 : vector<8x32xf32>
      %76 = math.tanh %71 : vector<8x32xf32>
      %77 = arith.mulf %41, %76 : vector<8x32xf32>
      %78 = math.tanh %75 : vector<8x32xf32>
      %79 = arith.mulf %67, %78 : vector<8x32xf32>
      %80 = arith.addf %77, %79 : vector<8x32xf32>
      %c0_36 = arith.constant 0 : index
      %c0_37 = arith.constant 0 : index
      %81 = vector.load %arg7[%c0_36, %c0_37] : memref<8x96xf32, #tpu.memory_space<vmem>>, vector<8x32xf32>
      tpu.vector_store %arg7[%c0_36, %c0_37], %80 {strides = array<i32>} : memref<8x96xf32, #tpu.memory_space<vmem>>, vector<8x32xf32>,
      %c0_38 = arith.constant 0 : index
      %c32 = arith.constant 32 : index
      %82 = vector.load %arg7[%c0_38, %c32] : memref<8x96xf32, #tpu.memory_space<vmem>>, vector<8x32xf32>
      tpu.vector_store %arg7[%c0_38, %c32], %71 {strides = array<i32>} : memref<8x96xf32, #tpu.memory_space<vmem>>, vector<8x32xf32>,
      %c0_39 = arith.constant 0 : index
      %c64 = arith.constant 64 : index
      %83 = vector.load %arg7[%c0_39, %c64] : memref<8x96xf32, #tpu.memory_space<vmem>>, vector<8x32xf32>
      tpu.vector_store %arg7[%c0_39, %c64], %75 {strides = array<i32>} : memref<8x96xf32, #tpu.memory_space<vmem>>, vector<8x32xf32>,
    } else {
    }
    return
  }
  func.func @transform_0(%arg0: i32, %arg1: i32) -> (i32, i32) {
    %c0_i32 = arith.constant 0 : i32
    return %arg0, %arg1 : i32, i32
  }
  func.func @transform_1(%arg0: i32, %arg1: i32) -> (i32, i32) {
    %c0_i32 = arith.constant 0 : i32
    %c0_i32_0 = arith.constant 0 : i32
    return %arg0, %c0_i32 : i32, i32
  }
  func.func @transform_2(%arg0: i32, %arg1: i32) -> (i32, i32) {
    %c0_i32 = arith.constant 0 : i32
    %c0_i32_0 = arith.constant 0 : i32
    return %arg0, %c0_i32 : i32, i32
  }
  func.func @transform_3(%arg0: i32, %arg1: i32) -> (i32, i32) {
    %c0_i32 = arith.constant 0 : i32
    %c0_i32_0 = arith.constant 0 : i32
    return %arg1, %c0_i32 : i32, i32
  }
  func.func @transform_4(%arg0: i32, %arg1: i32) -> (i32, i32) {
    %c0_i32 = arith.constant 0 : i32
    %c0_i32_0 = arith.constant 0 : i32
    %c0_i32_1 = arith.constant 0 : i32
    return %c0_i32, %c0_i32_0 : i32, i32
  }
  func.func @transform_5(%arg0: i32, %arg1: i32) -> (i32, i32) {
    %c0_i32 = arith.constant 0 : i32
    %c0_i32_0 = arith.constant 0 : i32
    return %arg0, %c0_i32 : i32, i32
  }
}

</mosaic_0001>

<llo_original>
// kernel: cerebral_lstm_cell.1
$region0: #{cerebral_lstm_cell.1}
  #allocation0 [shape = 'u32[]', space=smem, size = 0x4, offset = 0x4, fixed_abs, tag = 'smem constant byte address 0x4 - core index']
  #allocation1 [shape = 'u32[144,128]{1,0:T(1,128)}', space=vmem, size = 0x12000, scoped, tag = 'internal scratch']
  #allocation2 [shape = 'f32[8,256]{1,0:T(8,128)}', space=vmem, size = 0x2000, scoped, tag = 'scratch operand']
  %s0 = inlined_call_operand.vmem [shape: bf16[8,48], index: 0, kind: input, shape index: {}]
  %s1 = inlined_call_operand.vmem [shape: f32[8,32], index: 1, kind: input, shape index: {}]
  %s2 = inlined_call_operand.vmem [shape: f32[8,32], index: 2, kind: input, shape index: {}]
  %s3 = inlined_call_operand.vmem [shape: bf16[48,256], index: 3, kind: input, shape index: {}]
  %s4 = inlined_call_operand.vmem [shape: f32[1,256], index: 4, kind: input, shape index: {}]
  %s5 = inlined_call_operand.vmem [shape: f32[8,96], index: 5, kind: output, shape index: {}]
  %s6 = sld [smem:[#allocation0]]
  $region38: #{cerebral_lstm_cell.1} parent=0
    _
  %s8 = ssub.s32 1, %s6
  %s9 = scalar_select 0, %s8, %s6
  // Predicated region
  $region2: #{cerebral_lstm_cell.1} parent=0 // pred_check
    _
  $region3: #{cerebral_lstm_cell.1} parent=0 // pred_check_branch
    %11 = sbr.rel (0) target = $region5
  $region4: #{cerebral_lstm_cell.1} parent=0 // pred_region
    _
  $region5: #{cerebral_lstm_cell.1} parent=0 // pred_fallthru
    _
  // Predicated region
  $region6: #{cerebral_lstm_cell.1} parent=0 // pred_check
    _
  $region7: #{cerebral_lstm_cell.1} parent=0 // pred_check_branch
    %13 = sbr.rel (0) target = $region9
  $region8: #{cerebral_lstm_cell.1} parent=0 // pred_region
    _
  $region9: #{cerebral_lstm_cell.1} parent=0 // pred_fallthru
    _
  // Predicated region
  $region10: #{cerebral_lstm_cell.1} parent=0 // pred_check
    _
  $region11: #{cerebral_lstm_cell.1} parent=0 // pred_check_branch
    %15 = sbr.rel (0) target = $region13
  $region12: #{cerebral_lstm_cell.1} parent=0 // pred_region
    _
  $region13: #{cerebral_lstm_cell.1} parent=0 // pred_fallthru
    _
  // Predicated region
  $region14: #{cerebral_lstm_cell.1} parent=0 // pred_check
    _
  $region15: #{cerebral_lstm_cell.1} parent=0 // pred_check_branch
    %17 = sbr.rel (0) target = $region17
  $region16: #{cerebral_lstm_cell.1} parent=0 // pred_region
    _
  $region17: #{cerebral_lstm_cell.1} parent=0 // pred_fallthru
    _
  // Predicated region
  $region18: #{cerebral_lstm_cell.1} parent=0 // pred_check
    _
  $region19: #{cerebral_lstm_cell.1} parent=0 // pred_check_branch
    %19 = sbr.rel (0) target = $region21
  $region20: #{cerebral_lstm_cell.1} parent=0 // pred_region
    _
  $region21: #{cerebral_lstm_cell.1} parent=0 // pred_fallthru
    _
  %p21 = scmp.eq.s32.totalorder 0, 0
  // Predicated region
  $region22: #{cerebral_lstm_cell.1} parent=0 // pred_check
    %p22 = pneg %p21
  $region23: #{cerebral_lstm_cell.1} parent=0 // pred_check_branch
    %24 = sbr.rel (%p22) target = $region25
  $region24: #{cerebral_lstm_cell.1} parent=0 // pred_region
    %25 = vst [vmem:[#allocation2] sm:$0xff] 0.0
    %26 = vst [vmem:[#allocation2 + $0x8] sm:$0xff] 0.0
  $region25: #{cerebral_lstm_cell.1} parent=0 // pred_fallthru
    _
  %v27 = vld [vmem:[#allocation2] sm:$0xff]
  %v28 = vld [vmem:[#allocation2 + $0x8] sm:$0xff]
  %v29 = vld [vmem:[%s0] sm:$0xf]
  %v30 = vld [vmem:[%s3] sm:$0xff]
  %v31 = vld [vmem:[%s3 + $0x8] sm:$0xff]
  %v32 = vld [vmem:[%s3 + $0x10] sm:$0xff]
  %v33 = vld [vmem:[%s3 + $0x18] sm:$0xff]
  %v34 = vld [vmem:[%s3 + $0x20] sm:$0xff]
  %v35 = vld [vmem:[%s3 + $0x28] sm:$0xff]
  %v42 = vunpack.c.l.b16 %v30
  %v43 = vunpack.c.h.b16 %v30
  %v44 = vunpack.c.l.b16 %v31
  %v45 = vunpack.c.h.b16 %v31
  %v46 = vunpack.c.l.b16 %v32
  %v47 = vunpack.c.h.b16 %v32
  %v48 = vunpack.c.l.b16 %v33
  %v49 = vunpack.c.h.b16 %v33
  %v50 = vunpack.c.l.b16 %v34
  %v51 = vunpack.c.h.b16 %v34
  %v52 = vunpack.c.l.b16 %v35
  %v53 = vunpack.c.h.b16 %v35
  %v54 = vpack.c.b16 %v44, %v42
  %v55 = vpack.c.b16 %v45, %v43
  %v56 = vpack.c.b16 %v48, %v46
  %v57 = vpack.c.b16 %v49, %v47
  %v58 = vpack.c.b16 %v52, %v50
  %v59 = vpack.c.b16 %v53, %v51
  %vm66 = vcmask 392192
  %v68 = vsel %vm66, %v29, 0
  %70 = vmatprep.subr.bf16.mxu0 %v55
  %71 = vmatpush1.bf16.msra.mxu0 %v54
  %72 = vmatprep.subr.bf16.mxu0 %v57
  %73 = vmatpush1.bf16.msra.mxu0 %v56
  %74 = vmatprep.subr.bf16.mxu0 %v59
  %75 = vmatpush1.bf16.msra.mxu0 %v58
  %76 = vmatprep.subr.bf16.mxu0 0
  %77 = vmatpush1.bf16.msra.mxu0 0
  %78 = vmatprep.subr.bf16.mxu0 0
  %79 = vmatpush1.bf16.msra.mxu0 0
  %80 = vmatprep.subr.bf16.mxu0 0
  %81 = vmatpush1.bf16.msra.mxu0 0
  %82 = vmatprep.subr.bf16.mxu0 0
  %83 = vmatpush1.bf16.msra.mxu0 0
  %84 = vmatprep.subr.bf16.mxu0 0
  %85 = vmatpush1.bf16.msra.mxu0 0
  %86 = vmatprep.subr.bf16.mxu0 0
  %87 = vmatpush1.bf16.msra.mxu0 0
  %88 = vmatprep.subr.bf16.mxu0 0
  %89 = vmatpush1.bf16.msra.mxu0 0
  %90 = vmatprep.subr.bf16.mxu0 0
  %91 = vmatpush1.bf16.msra.mxu0 0
  %92 = vmatprep.subr.bf16.mxu0 0
  %93 = vmatpush1.bf16.msra.mxu0 0
  %94 = vmatprep.subr.bf16.mxu0 0
  %95 = vmatpush1.bf16.msra.mxu0 0
  %96 = vmatprep.subr.bf16.mxu0 0
  %97 = vmatpush1.bf16.msra.mxu0 0
  %98 = vmatprep.subr.bf16.mxu0 0
  %99 = vmatpush1.bf16.msra.mxu0 0
  %100 = vmatprep.subr.bf16.mxu0 0
  %101 = vmatpush1.bf16.msra.mxu0 0
  %102 = vmatprep.mubr.bf16.mxu0 0
  %103 = vmatmul.mubr.bf16.gmra.mrb[0].mxu0 %v68
  %v104 = vpop.f32.mrb[0].mxu0
  %v105 = vadd.f32 0.0, %v104
  %v106 = vpop.f32.mrb[0].mxu0
  %v107 = vadd.f32 0.0, %v106
  %v108 = vpop.f32.mrb[0].mxu0
  %v109 = vpop.f32.mrb[0].mxu0
  %110 = vdwg.mxu0
  %v111 = vadd.f32 %v27, %v105
  %v112 = vadd.f32 %v28, %v107
  %113 = vst [vmem:[#allocation2] sm:$0xff] %v111
  %114 = vst [vmem:[#allocation2 + $0x8] sm:$0xff] %v112
  // Predicated region
  $region26: #{cerebral_lstm_cell.1} parent=0 // pred_check
    %p115 = pneg %p21
  $region27: #{cerebral_lstm_cell.1} parent=0 // pred_check_branch
    %117 = sbr.rel (%p115) target = $region29
  $region28: #{cerebral_lstm_cell.1} parent=0 // pred_region
    %v118 = vld [vmem:[#allocation2] sm:$0xff]
    %v119 = vld [vmem:[#allocation2 + $0x8] sm:$0xff]
    %v120 = vld [vmem:[%s4] sm:$0x3]
    %v122 = vlaneseq
    %v123 = vshrl.u32 %v122, 7
    %v124 = vsub.s32 0, %v123
    %v125 = vrot.slane %v120, %v124
    %v126 = vlaneseq
    %v127 = vshrl.u32 %v126, 7
    %v128 = vsub.s32 1, %v127
    %v129 = vrot.slane %v120, %v128
    %v132 = vadd.f32 %v118, %v125
    %v133 = vadd.f32 %v119, %v129
    %v134 = vsub.f32 0.0, %v132
    %v135 = vmul.f32 %v134, 1.442695
    %v136 = vpow.pop %v135
    %v137 = vadd.f32 %v136, 1.0
    %v138 = vrcp.pop %v137
    %v139 = vmul.f32 1.0, %v138
    %v140 = vtanh.pop %v132
    %v141 = vsub.f32 0.0, %v133
    %v142 = vmul.f32 %v141, 1.442695
    %v143 = vpow.pop %v142
    %v144 = vadd.f32 %v143, 1.0
    %v145 = vrcp.pop %v144
    %v146 = vmul.f32 1.0, %v145
    %v147 = vtanh.pop %v133
    %v148 = vld [vmem:[%s1] sm:$0xff]
    %v149 = vmul.f32 %v139, %v148
    %151 = vrot.lane.b32.xlu0 %v140, 96
    %v152 = vpop.permute.xlu0 %151
    %v154 = vmul.f32 %v139, %v152
    %156 = vrot.lane.b32.xlu0 %v154, 96
    %v157 = vpop.permute.xlu0 %156
    %v159 = vadd.f32 %v149, %v157
    %v160 = vld [vmem:[%s2] sm:$0xff]
    %v161 = vmul.f32 %v146, %v160
    %163 = vrot.lane.b32.xlu0 %v147, 96
    %v164 = vpop.permute.xlu0 %163
    %v166 = vmul.f32 %v146, %v164
    %168 = vrot.lane.b32.xlu0 %v166, 96
    %v169 = vpop.permute.xlu0 %168
    %v171 = vadd.f32 %v161, %v169
    %v172 = vtanh.pop %v159
    %174 = vrot.lane.b32.xlu0 %v172, 96
    %v175 = vpop.permute.xlu0 %174
    %v177 = vmul.f32 %v139, %v175
    %v178 = vtanh.pop %v171
    %180 = vrot.lane.b32.xlu0 %v178, 96
    %v181 = vpop.permute.xlu0 %180
    %v183 = vmul.f32 %v146, %v181
    %v184 = vadd.f32 %v177, %v183
    %186 = vrot.lane.b32.xlu0 %v184, 32
    %v187 = vpop.permute.xlu0 %186
    %vm189 = vcmask 261120
    %190 = vst.msk [vmem:[%s5] sm:$0xff] %vm189, %v187
    %192 = vrot.lane.b32.xlu0 %v159, 32
    %v193 = vpop.permute.xlu0 %192
    %vm195 = vcmask 523520
    %196 = vst.msk [vmem:[%s5] sm:$0xff] %vm195, %v193
    %198 = vrot.lane.b32.xlu0 %v171, 64
    %v199 = vpop.permute.xlu0 %198
    %vm201 = vcmask 785920
    %202 = vst.msk [vmem:[%s5] sm:$0xff] %vm201, %v199
  $region29: #{cerebral_lstm_cell.1} parent=0 // pred_fallthru
    _
  // Predicated region
  $region30: #{cerebral_lstm_cell.1} parent=0 // pred_check
    _
  $region31: #{cerebral_lstm_cell.1} parent=0 // pred_check_branch
    %204 = sbr.rel (0) target = $region33
  $region32: #{cerebral_lstm_cell.1} parent=0 // pred_region
    _
  $region33: #{cerebral_lstm_cell.1} parent=0 // pred_fallthru
    _
  // Predicated region
  $region34: #{cerebral_lstm_cell.1} parent=0 // pred_check
    _
  $region35: #{cerebral_lstm_cell.1} parent=0 // pred_check_branch
    %206 = sbr.rel (0) target = $region37
  $region36: #{cerebral_lstm_cell.1} parent=0 // pred_region
    _
  $region37: #{cerebral_lstm_cell.1} parent=0 // pred_fallthru
    _

</llo_original>
